<compile_context>
chip_gen: v6e
topology: v6e:2x2x1
jax: 0.10.0
libtpu: 0.0.40
codegen_flags: <defaults>
</compile_context>

<pallas_src>
import functools

import jax
import jax.numpy as jnp
from jax import lax
from jax.experimental import pallas as pl
from jax.experimental.pallas import tpu as pltpu


# ------------------------------ fused kernel ------------------------------- #

def _fused_attention_kernel(
    x_ref, w_qkv_ref, w_proj_ref, b_proj_ref, o_ref, *, num_heads, scale
):
    """One grid step = `Bt` batch elements: qkv -> per-head softmax(QK^T)V ->
    per-head accumulated projection.  All intermediates stay on-chip."""
    Bt, N, C = x_ref.shape
    hd = C // num_heads
    mxu_dtype = w_qkv_ref.dtype          # weights were pre-cast once in the wrapper

    # 1) qkv for all Bt batch elements in ONE MXU op: (Bt*N, 3C), f32 accumulation.
    #    (N is sublane-aligned for f32, so the fold of the batch dim is free.)
    x2 = x_ref[...].reshape(Bt * N, C).astype(mxu_dtype)
    qkv = jnp.dot(x2, w_qkv_ref[...], preferred_element_type=jnp.float32)

    w_proj = w_proj_ref[...]             # (C, C), already mxu_dtype
    bias = b_proj_ref[...]               # (1, C), f32, broadcast over tokens

    # 2) Per batch element / per head: static row/lane slices of the VMEM-resident
    #    qkv slab; per-head contexts are folded directly into the output
    #    projection accumulator (no lane-offset concatenate / relayout).
    for b in range(Bt):
        r0 = b * N
        acc = jnp.zeros((N, C), jnp.float32)
        for h in range(num_heads):
            lo = h * hd
            # softmax scale folded into q: N*hd multiplies instead of N*N.
            q_h = (qkv[r0:r0 + N, lo:lo + hd] * scale).astype(mxu_dtype)
            k_h = qkv[r0:r0 + N, C + lo:C + lo + hd].astype(mxu_dtype)
            v_h = qkv[r0:r0 + N, 2 * C + lo:2 * C + lo + hd].astype(mxu_dtype)

            # QK^T: contract the last dims directly (no k.T materialization).
            s = lax.dot_general(
                q_h, k_h,
                dimension_numbers=(((1,), (1,)), ((), ())),
                preferred_element_type=jnp.float32,
            )

            # Numerically-stable softmax over keys, f32 statistics; the
            # normalization divide goes to the EUP via approx reciprocal.
            s = s - jnp.max(s, axis=-1, keepdims=True)
            p = jnp.exp(s)
            p = p * pl.reciprocal(jnp.sum(p, axis=-1, keepdims=True), approx=True)

            ctx_h = jnp.dot(
                p.astype(mxu_dtype), v_h, preferred_element_type=jnp.float32
            )
            # Per-head partial projection accumulate: ctx_h @ W_proj[rows of head h].
            acc = acc + jnp.dot(
                ctx_h.astype(mxu_dtype), w_proj[lo:lo + hd, :],
                preferred_element_type=jnp.float32,
            )

        # 3) bias add + lane-dense (N, C) store for this batch element.
        o_ref[b, :, :] = (acc + bias).astype(o_ref.dtype)


# -------------------------------- wrapper ----------------------------------- #

def _pick_batch_block(B, N, max_rows=1024):
    """Largest divisor of B that keeps the per-step row count bounded while
    leaving >= 2 grid steps (so both v7x TensorCores get work)."""
    candidates = [bb for bb in range(1, B + 1) if B % bb == 0 and bb * N <= max_rows]
    if not candidates:
        return 1
    two_step = [bb for bb in candidates if B // bb >= 2]
    return max(two_step) if two_step else max(candidates)


def attention_forward(
    x, w_qkv, w_proj, b_proj, num_heads,
    *,
    mxu_dtype=jnp.bfloat16,          # bf16 MXU inputs by default; f32 accumulation
    batch_block=None,
    single_buffer_weights=False,     # set True on v7x (64 MiB VMEM) to keep the
                                     # constant weight blocks single-buffered
    vmem_limit_bytes=32 * 1024 * 1024,
):
    """Forward pass matching Attention.forward (dropout p=0, adapt_bn unused)."""
    B, N, C = x.shape
    head_dim = C // num_heads
    scale = head_dim ** (-0.5)

    if batch_block is None:
        batch_block = _pick_batch_block(B, N)
    assert B % batch_block == 0, "batch_block must divide B"

    # Pre-cast the (constant) weights ONCE here instead of per grid step.
    w_qkv = w_qkv.astype(mxu_dtype)
    w_proj = w_proj.astype(mxu_dtype)
    b_proj = b_proj.reshape(1, C).astype(jnp.float32)   # bias stays f32

    def _const_spec(shape):
        if single_buffer_weights:
            # Constant-index inputs need no double buffer (v7x VMEM hygiene).
            return pl.BlockSpec(shape, lambda b: tuple(0 for _ in shape),
                                pipeline_mode=pl.Buffered(1))
        return pl.BlockSpec(shape, lambda b: tuple(0 for _ in shape))

    kernel = functools.partial(
        _fused_attention_kernel, num_heads=num_heads, scale=scale
    )
    return pl.pallas_call(
        kernel,
        out_shape=jax.ShapeDtypeStruct((B, N, C), jnp.float32),
        grid=(B // batch_block,),
        in_specs=[
            pl.BlockSpec((batch_block, N, C), lambda b: (b, 0, 0)),   # x
            _const_spec((C, 3 * C)),                                  # w_qkv
            _const_spec((C, C)),                                      # w_proj
            _const_spec((1, C)),                                      # b_proj
        ],
        out_specs=pl.BlockSpec((batch_block, N, C), lambda b: (b, 0, 0)),
        compiler_params=pltpu.CompilerParams(
            dimension_semantics=("parallel",),        # batch axis -> both TCs on v7x
            vmem_limit_bytes=vmem_limit_bytes,
        ),
    )(x, w_qkv, w_proj, b_proj)


# ---------------------------------- main ------------------------------------ #

if __name__ == "__main__":
    # Small shapes consistent with the module: dim=C=32, num_heads=4 -> head_dim=8
    B, N, C, H = 2, 8, 32, 4

    key = jax.random.PRNGKey(0)
    k_x, k_qkv, k_pw, k_pb = jax.random.split(key, 4)

    x = jax.random.normal(k_x, (B, N, C), dtype=jnp.float32)
    # deterministic synthetic parameters (nn.Linear-shaped, stored as (in, out))
    w_qkv = jax.random.normal(k_qkv, (C, 3 * C), dtype=jnp.float32) * 0.05
    w_proj = jax.random.normal(k_pw, (C, C), dtype=jnp.float32) * 0.05
    b_proj = jax.random.normal(k_pb, (C,), dtype=jnp.float32) * 0.05

    # Default path: bf16 MXU inputs, f32 accumulation + f32 softmax.
    out = attention_forward(x, w_qkv, w_proj, b_proj, H)
    out = jax.block_until_ready(out)

    # pure-JAX f32 reference for a correctness check
    hd = C // H
    scale = hd ** (-0.5)
    qkv_ref = (x @ w_qkv).reshape(B, N, 3, H, hd).transpose(2, 0, 3, 1, 4)
    q_r, k_r, v_r = qkv_ref[0], qkv_ref[1], qkv_ref[2]
    attn_ref = jax.nn.softmax(
        jnp.einsum("bhnd,bhmd->bhnm", q_r, k_r) * scale, axis=-1
    )
    ref = (
        jnp.einsum("bhnm,bhmd->bhnd", attn_ref, v_r)
        .transpose(0, 2, 1, 3)
        .reshape(B, N, C)
        @ w_proj
        + b_proj
    )
    assert out.shape == (B, N, C)
    # Tolerance accounts for bf16 MXU operands and the approximate (EUP vrcp)
    # softmax normalization; accumulation and softmax statistics stay f32.
    assert jnp.allclose(out, ref, atol=2e-2, rtol=2e-2)

    print("KERNEL_OK")
</pallas_src>

<mosaic_0001>
module attributes {stable_mosaic.version = 11 : i64} {
  func.func @_fused_attention_kernel(%arg0: i32, %arg1: memref<1x8x32xf32, #tpu.memory_space<vmem>>, %arg2: memref<32x96xbf16, #tpu.memory_space<vmem>>, %arg3: memref<32x32xbf16, #tpu.memory_space<vmem>>, %arg4: memref<1x32xf32, #tpu.memory_space<vmem>>, %arg5: memref<1x8x32xf32, #tpu.memory_space<vmem>>) attributes {dimension_semantics = [#tpu.dimension_semantics<parallel>], iteration_bounds = array<i64: 2>, scalar_prefetch = 0 : i64, scratch_operands = 0 : i64, tpu.core_type = #tpu.core_type<tc>, window_params = [{transform_indices = @transform_0, window_bounds = array<i64: 1, 8, 32>}, {pipeline_mode = #tpu.pipeline_mode<synchronous>, transform_indices = @transform_1, window_bounds = array<i64: 32, 96>}, {pipeline_mode = #tpu.pipeline_mode<synchronous>, transform_indices = @transform_2, window_bounds = array<i64: 32, 32>}, {pipeline_mode = #tpu.pipeline_mode<synchronous>, transform_indices = @transform_3, window_bounds = array<i64: 1, 32>}, {transform_indices = @transform_4, window_bounds = array<i64: 1, 8, 32>}]} {
    %c0 = arith.constant 0 : index
    %c0_0 = arith.constant 0 : index
    %c0_1 = arith.constant 0 : index
    %0 = vector.load %arg1[%c0, %c0_0, %c0_1] : memref<1x8x32xf32, #tpu.memory_space<vmem>>, vector<1x8x32xf32>
    %1 = vector.shape_cast %0 : vector<1x8x32xf32> to vector<8x32xf32>
    %2 = arith.truncf %1 : vector<8x32xf32> to vector<8x32xbf16>
    %c0_2 = arith.constant 0 : index
    %c0_3 = arith.constant 0 : index
    %3 = vector.load %arg2[%c0_2, %c0_3] : memref<32x96xbf16, #tpu.memory_space<vmem>>, vector<32x96xbf16>
    %cst = arith.constant dense<0.000000e+00> : vector<8x96xf32>
    %4 = tpu.matmul %2, %3, %cst {dimension_numbers = #tpu.dot_dimension_numbers<[1], [0], [0], [1], [0, 0, 1, 1], [], []>} : vector<8x32xbf16>, vector<32x96xbf16>, vector<8x96xf32> -> vector<8x96xf32>
    %c0_4 = arith.constant 0 : index
    %c0_5 = arith.constant 0 : index
    %5 = vector.load %arg3[%c0_4, %c0_5] : memref<32x32xbf16, #tpu.memory_space<vmem>>, vector<32x32xbf16>
    %c0_6 = arith.constant 0 : index
    %c0_7 = arith.constant 0 : index
    %6 = vector.load %arg4[%c0_6, %c0_7] : memref<1x32xf32, #tpu.memory_space<vmem>>, vector<1x32xf32>
    %cst_8 = arith.constant 0.000000e+00 : f32
    %7 = vector.broadcast %cst_8 : f32 to vector<8x32xf32>
    %8 = vector.extract_strided_slice %4 {offsets = [0, 0], sizes = [8, 8], strides = [1, 1]} : vector<8x96xf32> to vector<8x8xf32>
    %cst_9 = arith.constant 0.353553385 : f32
    %9 = vector.broadcast %cst_9 : f32 to vector<8x8xf32>
    %10 = arith.mulf %8, %9 : vector<8x8xf32>
    %11 = arith.truncf %10 : vector<8x8xf32> to vector<8x8xbf16>
    %12 = vector.extract_strided_slice %4 {offsets = [0, 32], sizes = [8, 8], strides = [1, 1]} : vector<8x96xf32> to vector<8x8xf32>
    %13 = arith.truncf %12 : vector<8x8xf32> to vector<8x8xbf16>
    %14 = vector.extract_strided_slice %4 {offsets = [0, 64], sizes = [8, 8], strides = [1, 1]} : vector<8x96xf32> to vector<8x8xf32>
    %15 = arith.truncf %14 : vector<8x8xf32> to vector<8x8xbf16>
    %cst_10 = arith.constant dense<0.000000e+00> : vector<8x8xf32>
    %16 = tpu.matmul %11, %13, %cst_10 {dimension_numbers = #tpu.dot_dimension_numbers<[1], [1], [0], [0], [0, 0, 1, 0], [], []>} : vector<8x8xbf16>, vector<8x8xbf16>, vector<8x8xf32> -> vector<8x8xf32>
    %cst_11 = arith.constant dense<0xFF800000> : vector<8xf32>
    %17 = vector.multi_reduction <maximumf>, %16, %cst_11 [1] : vector<8x8xf32> to vector<8xf32>
    %18 = vector.shape_cast %17 : vector<8xf32> to vector<8x1xf32>
    %19 = vector.broadcast %18 : vector<8x1xf32> to vector<8x8xf32>
    %20 = arith.subf %16, %19 : vector<8x8xf32>
    %21 = math.exp %20 : vector<8x8xf32>
    %cst_12 = arith.constant dense<0.000000e+00> : vector<8xf32>
    %22 = vector.multi_reduction <add>, %21, %cst_12 [1] : vector<8x8xf32> to vector<8xf32>
    %23 = vector.shape_cast %22 : vector<8xf32> to vector<8x1xf32>
    %24 = tpu.reciprocal %23 {approx = true} : vector<8x1xf32> -> vector<8x1xf32>
    %25 = vector.broadcast %24 : vector<8x1xf32> to vector<8x8xf32>
    %26 = arith.mulf %21, %25 : vector<8x8xf32>
    %27 = arith.truncf %26 : vector<8x8xf32> to vector<8x8xbf16>
    %cst_13 = arith.constant dense<0.000000e+00> : vector<8x8xf32>
    %28 = tpu.matmul %27, %15, %cst_13 {dimension_numbers = #tpu.dot_dimension_numbers<[1], [0], [0], [1], [0, 0, 1, 1], [], []>} : vector<8x8xbf16>, vector<8x8xbf16>, vector<8x8xf32> -> vector<8x8xf32>
    %29 = arith.truncf %28 : vector<8x8xf32> to vector<8x8xbf16>
    %30 = vector.extract_strided_slice %5 {offsets = [0, 0], sizes = [8, 32], strides = [1, 1]} : vector<32x32xbf16> to vector<8x32xbf16>
    %cst_14 = arith.constant dense<0.000000e+00> : vector<8x32xf32>
    %31 = tpu.matmul %29, %30, %cst_14 {dimension_numbers = #tpu.dot_dimension_numbers<[1], [0], [0], [1], [0, 0, 1, 1], [], []>} : vector<8x8xbf16>, vector<8x32xbf16>, vector<8x32xf32> -> vector<8x32xf32>
    %32 = arith.addf %7, %31 : vector<8x32xf32>
    %33 = vector.extract_strided_slice %4 {offsets = [0, 8], sizes = [8, 8], strides = [1, 1]} : vector<8x96xf32> to vector<8x8xf32>
    %cst_15 = arith.constant 0.353553385 : f32
    %34 = vector.broadcast %cst_15 : f32 to vector<8x8xf32>
    %35 = arith.mulf %33, %34 : vector<8x8xf32>
    %36 = arith.truncf %35 : vector<8x8xf32> to vector<8x8xbf16>
    %37 = vector.extract_strided_slice %4 {offsets = [0, 40], sizes = [8, 8], strides = [1, 1]} : vector<8x96xf32> to vector<8x8xf32>
    %38 = arith.truncf %37 : vector<8x8xf32> to vector<8x8xbf16>
    %39 = vector.extract_strided_slice %4 {offsets = [0, 72], sizes = [8, 8], strides = [1, 1]} : vector<8x96xf32> to vector<8x8xf32>
    %40 = arith.truncf %39 : vector<8x8xf32> to vector<8x8xbf16>
    %cst_16 = arith.constant dense<0.000000e+00> : vector<8x8xf32>
    %41 = tpu.matmul %36, %38, %cst_16 {dimension_numbers = #tpu.dot_dimension_numbers<[1], [1], [0], [0], [0, 0, 1, 0], [], []>} : vector<8x8xbf16>, vector<8x8xbf16>, vector<8x8xf32> -> vector<8x8xf32>
    %cst_17 = arith.constant dense<0xFF800000> : vector<8xf32>
    %42 = vector.multi_reduction <maximumf>, %41, %cst_17 [1] : vector<8x8xf32> to vector<8xf32>
    %43 = vector.shape_cast %42 : vector<8xf32> to vector<8x1xf32>
    %44 = vector.broadcast %43 : vector<8x1xf32> to vector<8x8xf32>
    %45 = arith.subf %41, %44 : vector<8x8xf32>
    %46 = math.exp %45 : vector<8x8xf32>
    %cst_18 = arith.constant dense<0.000000e+00> : vector<8xf32>
    %47 = vector.multi_reduction <add>, %46, %cst_18 [1] : vector<8x8xf32> to vector<8xf32>
    %48 = vector.shape_cast %47 : vector<8xf32> to vector<8x1xf32>
    %49 = tpu.reciprocal %48 {approx = true} : vector<8x1xf32> -> vector<8x1xf32>
    %50 = vector.broadcast %49 : vector<8x1xf32> to vector<8x8xf32>
    %51 = arith.mulf %46, %50 : vector<8x8xf32>
    %52 = arith.truncf %51 : vector<8x8xf32> to vector<8x8xbf16>
    %cst_19 = arith.constant dense<0.000000e+00> : vector<8x8xf32>
    %53 = tpu.matmul %52, %40, %cst_19 {dimension_numbers = #tpu.dot_dimension_numbers<[1], [0], [0], [1], [0, 0, 1, 1], [], []>} : vector<8x8xbf16>, vector<8x8xbf16>, vector<8x8xf32> -> vector<8x8xf32>
    %54 = arith.truncf %53 : vector<8x8xf32> to vector<8x8xbf16>
    %55 = vector.extract_strided_slice %5 {offsets = [8, 0], sizes = [8, 32], strides = [1, 1]} : vector<32x32xbf16> to vector<8x32xbf16>
    %cst_20 = arith.constant dense<0.000000e+00> : vector<8x32xf32>
    %56 = tpu.matmul %54, %55, %cst_20 {dimension_numbers = #tpu.dot_dimension_numbers<[1], [0], [0], [1], [0, 0, 1, 1], [], []>} : vector<8x8xbf16>, vector<8x32xbf16>, vector<8x32xf32> -> vector<8x32xf32>
    %57 = arith.addf %32, %56 : vector<8x32xf32>
    %58 = vector.extract_strided_slice %4 {offsets = [0, 16], sizes = [8, 8], strides = [1, 1]} : vector<8x96xf32> to vector<8x8xf32>
    %cst_21 = arith.constant 0.353553385 : f32
    %59 = vector.broadcast %cst_21 : f32 to vector<8x8xf32>
    %60 = arith.mulf %58, %59 : vector<8x8xf32>
    %61 = arith.truncf %60 : vector<8x8xf32> to vector<8x8xbf16>
    %62 = vector.extract_strided_slice %4 {offsets = [0, 48], sizes = [8, 8], strides = [1, 1]} : vector<8x96xf32> to vector<8x8xf32>
    %63 = arith.truncf %62 : vector<8x8xf32> to vector<8x8xbf16>
    %64 = vector.extract_strided_slice %4 {offsets = [0, 80], sizes = [8, 8], strides = [1, 1]} : vector<8x96xf32> to vector<8x8xf32>
    %65 = arith.truncf %64 : vector<8x8xf32> to vector<8x8xbf16>
    %cst_22 = arith.constant dense<0.000000e+00> : vector<8x8xf32>
    %66 = tpu.matmul %61, %63, %cst_22 {dimension_numbers = #tpu.dot_dimension_numbers<[1], [1], [0], [0], [0, 0, 1, 0], [], []>} : vector<8x8xbf16>, vector<8x8xbf16>, vector<8x8xf32> -> vector<8x8xf32>
    %cst_23 = arith.constant dense<0xFF800000> : vector<8xf32>
    %67 = vector.multi_reduction <maximumf>, %66, %cst_23 [1] : vector<8x8xf32> to vector<8xf32>
    %68 = vector.shape_cast %67 : vector<8xf32> to vector<8x1xf32>
    %69 = vector.broadcast %68 : vector<8x1xf32> to vector<8x8xf32>
    %70 = arith.subf %66, %69 : vector<8x8xf32>
    %71 = math.exp %70 : vector<8x8xf32>
    %cst_24 = arith.constant dense<0.000000e+00> : vector<8xf32>
    %72 = vector.multi_reduction <add>, %71, %cst_24 [1] : vector<8x8xf32> to vector<8xf32>
    %73 = vector.shape_cast %72 : vector<8xf32> to vector<8x1xf32>
    %74 = tpu.reciprocal %73 {approx = true} : vector<8x1xf32> -> vector<8x1xf32>
    %75 = vector.broadcast %74 : vector<8x1xf32> to vector<8x8xf32>
    %76 = arith.mulf %71, %75 : vector<8x8xf32>
    %77 = arith.truncf %76 : vector<8x8xf32> to vector<8x8xbf16>
    %cst_25 = arith.constant dense<0.000000e+00> : vector<8x8xf32>
    %78 = tpu.matmul %77, %65, %cst_25 {dimension_numbers = #tpu.dot_dimension_numbers<[1], [0], [0], [1], [0, 0, 1, 1], [], []>} : vector<8x8xbf16>, vector<8x8xbf16>, vector<8x8xf32> -> vector<8x8xf32>
    %79 = arith.truncf %78 : vector<8x8xf32> to vector<8x8xbf16>
    %80 = vector.extract_strided_slice %5 {offsets = [16, 0], sizes = [8, 32], strides = [1, 1]} : vector<32x32xbf16> to vector<8x32xbf16>
    %cst_26 = arith.constant dense<0.000000e+00> : vector<8x32xf32>
    %81 = tpu.matmul %79, %80, %cst_26 {dimension_numbers = #tpu.dot_dimension_numbers<[1], [0], [0], [1], [0, 0, 1, 1], [], []>} : vector<8x8xbf16>, vector<8x32xbf16>, vector<8x32xf32> -> vector<8x32xf32>
    %82 = arith.addf %57, %81 : vector<8x32xf32>
    %83 = vector.extract_strided_slice %4 {offsets = [0, 24], sizes = [8, 8], strides = [1, 1]} : vector<8x96xf32> to vector<8x8xf32>
    %cst_27 = arith.constant 0.353553385 : f32
    %84 = vector.broadcast %cst_27 : f32 to vector<8x8xf32>
    %85 = arith.mulf %83, %84 : vector<8x8xf32>
    %86 = arith.truncf %85 : vector<8x8xf32> to vector<8x8xbf16>
    %87 = vector.extract_strided_slice %4 {offsets = [0, 56], sizes = [8, 8], strides = [1, 1]} : vector<8x96xf32> to vector<8x8xf32>
    %88 = arith.truncf %87 : vector<8x8xf32> to vector<8x8xbf16>
    %89 = vector.extract_strided_slice %4 {offsets = [0, 88], sizes = [8, 8], strides = [1, 1]} : vector<8x96xf32> to vector<8x8xf32>
    %90 = arith.truncf %89 : vector<8x8xf32> to vector<8x8xbf16>
    %cst_28 = arith.constant dense<0.000000e+00> : vector<8x8xf32>
    %91 = tpu.matmul %86, %88, %cst_28 {dimension_numbers = #tpu.dot_dimension_numbers<[1], [1], [0], [0], [0, 0, 1, 0], [], []>} : vector<8x8xbf16>, vector<8x8xbf16>, vector<8x8xf32> -> vector<8x8xf32>
    %cst_29 = arith.constant dense<0xFF800000> : vector<8xf32>
    %92 = vector.multi_reduction <maximumf>, %91, %cst_29 [1] : vector<8x8xf32> to vector<8xf32>
    %93 = vector.shape_cast %92 : vector<8xf32> to vector<8x1xf32>
    %94 = vector.broadcast %93 : vector<8x1xf32> to vector<8x8xf32>
    %95 = arith.subf %91, %94 : vector<8x8xf32>
    %96 = math.exp %95 : vector<8x8xf32>
    %cst_30 = arith.constant dense<0.000000e+00> : vector<8xf32>
    %97 = vector.multi_reduction <add>, %96, %cst_30 [1] : vector<8x8xf32> to vector<8xf32>
    %98 = vector.shape_cast %97 : vector<8xf32> to vector<8x1xf32>
    %99 = tpu.reciprocal %98 {approx = true} : vector<8x1xf32> -> vector<8x1xf32>
    %100 = vector.broadcast %99 : vector<8x1xf32> to vector<8x8xf32>
    %101 = arith.mulf %96, %100 : vector<8x8xf32>
    %102 = arith.truncf %101 : vector<8x8xf32> to vector<8x8xbf16>
    %cst_31 = arith.constant dense<0.000000e+00> : vector<8x8xf32>
    %103 = tpu.matmul %102, %90, %cst_31 {dimension_numbers = #tpu.dot_dimension_numbers<[1], [0], [0], [1], [0, 0, 1, 1], [], []>} : vector<8x8xbf16>, vector<8x8xbf16>, vector<8x8xf32> -> vector<8x8xf32>
    %104 = arith.truncf %103 : vector<8x8xf32> to vector<8x8xbf16>
    %105 = vector.extract_strided_slice %5 {offsets = [24, 0], sizes = [8, 32], strides = [1, 1]} : vector<32x32xbf16> to vector<8x32xbf16>
    %cst_32 = arith.constant dense<0.000000e+00> : vector<8x32xf32>
    %106 = tpu.matmul %104, %105, %cst_32 {dimension_numbers = #tpu.dot_dimension_numbers<[1], [0], [0], [1], [0, 0, 1, 1], [], []>} : vector<8x8xbf16>, vector<8x32xbf16>, vector<8x32xf32> -> vector<8x32xf32>
    %107 = arith.addf %82, %106 : vector<8x32xf32>
    %108 = vector.broadcast %6 : vector<1x32xf32> to vector<8x32xf32>
    %109 = arith.addf %107, %108 : vector<8x32xf32>
    %c0_33 = arith.constant 0 : index
    %c0_34 = arith.constant 0 : index
    %c0_35 = arith.constant 0 : index
    %110 = vector.load %arg5[%c0_33, %c0_34, %c0_35] : memref<1x8x32xf32, #tpu.memory_space<vmem>>, vector<1x8x32xf32>
    %111 = vector.shape_cast %110 : vector<1x8x32xf32> to vector<8x32xf32>
    %112 = vector.shape_cast %109 : vector<8x32xf32> to vector<1x8x32xf32>
    tpu.vector_store %arg5[%c0_33, %c0_34, %c0_35], %112 {strides = array<i32>} : memref<1x8x32xf32, #tpu.memory_space<vmem>>, vector<1x8x32xf32>,
    return
  }
  func.func @transform_0(%arg0: i32) -> (i32, i32, i32) {
    %c0_i32 = arith.constant 0 : i32
    %c0_i32_0 = arith.constant 0 : i32
    %c0_i32_1 = arith.constant 0 : i32
    return %arg0, %c0_i32, %c0_i32_0 : i32, i32, i32
  }
  func.func @transform_1(%arg0: i32) -> (i32, i32) {
    %c0_i32 = arith.constant 0 : i32
    %c0_i32_0 = arith.constant 0 : i32
    %c0_i32_1 = arith.constant 0 : i32
    return %c0_i32, %c0_i32_0 : i32, i32
  }
  func.func @transform_2(%arg0: i32) -> (i32, i32) {
    %c0_i32 = arith.constant 0 : i32
    %c0_i32_0 = arith.constant 0 : i32
    %c0_i32_1 = arith.constant 0 : i32
    return %c0_i32, %c0_i32_0 : i32, i32
  }
  func.func @transform_3(%arg0: i32) -> (i32, i32) {
    %c0_i32 = arith.constant 0 : i32
    %c0_i32_0 = arith.constant 0 : i32
    %c0_i32_1 = arith.constant 0 : i32
    return %c0_i32, %c0_i32_0 : i32, i32
  }
  func.func @transform_4(%arg0: i32) -> (i32, i32, i32) {
    %c0_i32 = arith.constant 0 : i32
    %c0_i32_0 = arith.constant 0 : i32
    %c0_i32_1 = arith.constant 0 : i32
    return %arg0, %c0_i32, %c0_i32_0 : i32, i32, i32
  }
}

</mosaic_0001>

<llo_original>
// kernel: tpu_custom_call.1
$region0: #{tpu_custom_call.1}
  #allocation0 [shape = 'u32[]', space=smem, size = 0x4, offset = 0x4, fixed_abs, tag = 'smem constant byte address 0x4 - core index']
  #allocation1 [shape = 'u32[144,128]{1,0:T(1,128)}', space=vmem, size = 0x12000, scoped, tag = 'internal scratch']
  %s0 = inlined_call_operand.hbm [shape: f32[2,8,32], index: 0, kind: input, shape index: {}]
  %s1 = inlined_call_operand.hbm [shape: bf16[32,96], index: 1, kind: input, shape index: {}]
  %s2 = inlined_call_operand.hbm [shape: bf16[32,32], index: 2, kind: input, shape index: {}]
  %s3 = inlined_call_operand.vmem [shape: f32[1,32], index: 3, kind: input, shape index: {}]
  %s4 = inlined_call_operand.hbm [shape: f32[2,8,32], index: 4, kind: output, shape index: {}]
  %s5 = sld [smem:[#allocation0]]
  $region61: #{tpu_custom_call.1} parent=0
    _
  %s7 = ssub.s32 1, %s5
  %s8 = scalar_select 0, %s7, %s5
  $region1: #{tpu_custom_call.1} parent=0
    #allocation2 [shape = 'u8[8192]{0}', space=vmem, size = 0x2000, scoped, tag = 'input window, operand 0']
    #allocation3 [shape = 's32[2]{0}', space=sflag, size = 0x8, scoped, tag = 'scoped memory for tpu_custom_call.1']
    #allocation4 [shape = 's32[2]{0}', space=sflag, size = 0x8, scoped, tag = 'scoped memory for tpu_custom_call.1']
    #allocation5 [shape = 'u8[8192]{0}', space=vmem, size = 0x2000, scoped, tag = 'input window, operand 1, single buffered']
    #allocation6 [shape = 's32[1]{0}', space=sflag, size = 0x4, scoped, tag = 'scoped memory for tpu_custom_call.1']
    #allocation7 [shape = 'u8[8192]{0}', space=vmem, size = 0x2000, scoped, tag = 'input window, operand 2, single buffered']
    #allocation8 [shape = 'u8[8192]{0}', space=vmem, size = 0x2000, scoped, tag = 'output window, operand 0']
    %9 = vsyncpa [#allocation3], 0
    %s10 = scalar_lea.sflag [#allocation3], 1
    %11 = vsyncpa %s10, 0
    %12 = vsyncpa [#allocation6], 0
    %13 = vsyncpa [#allocation4], 0
    %s14 = scalar_lea.sflag [#allocation4], 1
    %15 = vsyncpa %s14, 0
    loop: start=0, step=1, limit=4
    $region2: #{tpu_custom_call.1} parent=1 // loop_pre_header
      _
    $region3: #{tpu_custom_call.1} parent=1 // loop_header
      %s17 = sphi 0, %s21
      %p18 = scmp.ge.s32.totalorder %s17, 4
      %s27 = sphi 0, %s29
      %s30 = sphi 0, %s27
      %s31 = sphi 0, %s30
      %s47 = sphi 0, %s31
      %s51 = sphi 0, %s51
      %s53 = sphi 0, %s51
      %s54 = sphi 0, %s53
      %s68 = sphi 0, %s54
      %s72 = sphi 0, %s72
      %s74 = sphi 0, %s72
      %s75 = sphi 0, %s74
      %s89 = sphi 0, %s75
      %s93 = sphi 0, %s93
      %s95 = sphi 0, %s93
      %s96 = sphi 0, %s95
      %s110 = sphi 0, %s96
      %s116 = sphi 0, %s118
      %s119 = sphi 0, %s116
      %s120 = sphi 0, %s119
      %s136 = sphi 0, %s120
    $region4: #{tpu_custom_call.1} parent=1 // loop_header_branch
      %20 = sbr.rel (%p18) target = $region8
    $region5: #{tpu_custom_call.1} parent=1 // loop_body
      %s22 = ssub.s32 %s17, 1
      %s23 = ssub.s32 %s17, 2
      %s24 = sadd.s32 %s17, 1
      %s25 = ssub.s32 %s17, %s24
      %p26 = scmp.eq.s32.totalorder %s25, 0
      %s28 = sadd.s32 %s27, 1
      %s29 = scalar_select %p26, %s27, %s28
      %p32 = pneg %p26
      %p33 = scmp.eq.s32.totalorder %s17, 1
      %p34 = por %p32, %p33
      %p35 = scmp.ne.s32.totalorder %s27, %s30
      %p36 = scmp.eq.s32.totalorder %s17, 0
      %p37 = por %p35, %p36
      %p38 = scmp.ne.s32.totalorder %s27, %s30
      %p39 = scmp.eq.s32.totalorder %s22, 1
      %p40 = por %p38, %p39
      %p41 = scmp.ne.s32.totalorder %s30, %s31
      %p42 = scmp.eq.s32.totalorder %s22, 0
      %p43 = por %p41, %p42
      %p44 = scmp.ne.s32.totalorder %s30, %s31
      %p45 = scmp.eq.s32.totalorder %s23, 1
      %p46 = por %p44, %p45
      %p48 = scmp.ne.s32.totalorder %s31, %s47
      %p49 = scmp.eq.s32.totalorder %s23, 0
      %p50 = por %p48, %p49
      %s52 = sadd.s32 %s51, 1
      %p55 = scmp.eq.s32.totalorder %s17, 1
      %p56 = scmp.ne.s32.totalorder %s51, %s53
      %p57 = scmp.eq.s32.totalorder %s17, 0
      %p58 = por %p56, %p57
      %p59 = scmp.ne.s32.totalorder %s51, %s53
      %p60 = scmp.eq.s32.totalorder %s22, 1
      %p61 = por %p59, %p60
      %p62 = scmp.ne.s32.totalorder %s53, %s54
      %p63 = scmp.eq.s32.totalorder %s22, 0
      %p64 = por %p62, %p63
      %p65 = scmp.ne.s32.totalorder %s53, %s54
      %p66 = scmp.eq.s32.totalorder %s23, 1
      %p67 = por %p65, %p66
      %p69 = scmp.ne.s32.totalorder %s54, %s68
      %p70 = scmp.eq.s32.totalorder %s23, 0
      %p71 = por %p69, %p70
      %s73 = sadd.s32 %s72, 1
      %p76 = scmp.eq.s32.totalorder %s17, 1
      %p77 = scmp.ne.s32.totalorder %s72, %s74
      %p78 = scmp.eq.s32.totalorder %s17, 0
      %p79 = por %p77, %p78
      %p80 = scmp.ne.s32.totalorder %s72, %s74
      %p81 = scmp.eq.s32.totalorder %s22, 1
      %p82 = por %p80, %p81
      %p83 = scmp.ne.s32.totalorder %s74, %s75
      %p84 = scmp.eq.s32.totalorder %s22, 0
      %p85 = por %p83, %p84
      %p86 = scmp.ne.s32.totalorder %s74, %s75
      %p87 = scmp.eq.s32.totalorder %s23, 1
      %p88 = por %p86, %p87
      %p90 = scmp.ne.s32.totalorder %s75, %s89
      %p91 = scmp.eq.s32.totalorder %s23, 0
      %p92 = por %p90, %p91
      %s94 = sadd.s32 %s93, 1
      %p97 = scmp.eq.s32.totalorder %s17, 1
      %p98 = scmp.ne.s32.totalorder %s93, %s95
      %p99 = scmp.eq.s32.totalorder %s17, 0
      %p100 = por %p98, %p99
      %p101 = scmp.ne.s32.totalorder %s93, %s95
      %p102 = scmp.eq.s32.totalorder %s22, 1
      %p103 = por %p101, %p102
      %p104 = scmp.ne.s32.totalorder %s95, %s96
      %p105 = scmp.eq.s32.totalorder %s22, 0
      %p106 = por %p104, %p105
      %p107 = scmp.ne.s32.totalorder %s95, %s96
      %p108 = scmp.eq.s32.totalorder %s23, 1
      %p109 = por %p107, %p108
      %p111 = scmp.ne.s32.totalorder %s96, %s110
      %p112 = scmp.eq.s32.totalorder %s23, 0
      %p113 = por %p111, %p112
      %s114 = ssub.s32 %s17, %s24
      %p115 = scmp.eq.s32.totalorder %s114, 0
      %s117 = sadd.s32 %s116, 1
      %s118 = scalar_select %p115, %s116, %s117
      %p121 = pneg %p115
      %p122 = scmp.eq.s32.totalorder %s17, 1
      %p123 = por %p121, %p122
      %p124 = scmp.ne.s32.totalorder %s116, %s119
      %p125 = scmp.eq.s32.totalorder %s17, 0
      %p126 = por %p124, %p125
      %p127 = scmp.ne.s32.totalorder %s116, %s119
      %p128 = scmp.eq.s32.totalorder %s22, 1
      %p129 = por %p127, %p128
      %p130 = scmp.ne.s32.totalorder %s119, %s120
      %p131 = scmp.eq.s32.totalorder %s22, 0
      %p132 = por %p130, %p131
      %p133 = scmp.ne.s32.totalorder %s119, %s120
      %p134 = scmp.eq.s32.totalorder %s23, 1
      %p135 = por %p133, %p134
      %p137 = scmp.ne.s32.totalorder %s120, %s136
      %p138 = scmp.eq.s32.totalorder %s23, 0
      %p139 = por %p137, %p138
      %p140 = scmp.le.s32.totalorder 1, %s17
      %p141 = scmp.lt.s32.totalorder %s17, 3
      %p142 = pnand %p140, %p141
      %p143 = pneg %p142
      // Predicated region
      $region9: #{tpu_custom_call.1} parent=5 // pred_check
        _
      $region10: #{tpu_custom_call.1} parent=5 // pred_check_branch
        %145 = sbr.rel (%p142) target = $region12
      $region11: #{tpu_custom_call.1} parent=5 // pred_region
        %s146 = ssub.s32 %s17, 1
        // Predicated region
        $region13: #{tpu_custom_call.1} parent=11 // pred_check
          %p147 = pneg %p64
        $region14: #{tpu_custom_call.1} parent=11 // pred_check_branch
          %149 = sbr.rel (%p147) target = $region16
        $region15: #{tpu_custom_call.1} parent=11 // pred_region
          %s151 = ssub.s32 256, 256
          %152 = vsyncadd [#allocation6], %s151
          %s153 = sshll.u32 [#allocation5], 4
          %s154 = int_to_ptr.vmem [resolvable:$true] %s153
          %159 = dma.hbm_to_vmem [thread:$0]  %s1, 256, %s154, [#allocation6], 64, 64, 4
        $region16: #{tpu_custom_call.1} parent=11 // pred_fallthru
          _
        // Predicated region
        $region17: #{tpu_custom_call.1} parent=11 // pred_check
          %p160 = pneg %p85
        $region18: #{tpu_custom_call.1} parent=11 // pred_check_branch
          %162 = sbr.rel (%p160) target = $region20
        $region19: #{tpu_custom_call.1} parent=11 // pred_region
          %s164 = ssub.s32 256, 256
          %165 = vsyncadd [#allocation6], %s164
          %s166 = sshll.u32 [#allocation7], 4
          %s167 = int_to_ptr.vmem [resolvable:$true] %s166
          %172 = dma.hbm_to_vmem [thread:$0]  %s2, 256, %s167, [#allocation6], 64, 64, 4
        $region20: #{tpu_custom_call.1} parent=11 // pred_fallthru
          _
        // Predicated region
        $region21: #{tpu_custom_call.1} parent=11 // pred_check
          %p173 = pneg %p106
        $region22: #{tpu_custom_call.1} parent=11 // pred_check_branch
          %175 = sbr.rel (%p173) target = $region24
        $region23: #{tpu_custom_call.1} parent=11 // pred_region
          _
        $region24: #{tpu_custom_call.1} parent=11 // pred_fallthru
          _
      $region12: #{tpu_custom_call.1} parent=5 // pred_fallthru
        _
      %p176 = scmp.lt.s32.totalorder %s17, 2
      // Predicated region
      $region25: #{tpu_custom_call.1} parent=5 // pred_check
        %p177 = pneg %p176
      $region26: #{tpu_custom_call.1} parent=5 // pred_check_branch
        %179 = sbr.rel (%p177) target = $region28
      $region27: #{tpu_custom_call.1} parent=5 // pred_region
        // Predicated region
        $region29: #{tpu_custom_call.1} parent=27 // pred_check
          %p180 = pneg %p37
        $region30: #{tpu_custom_call.1} parent=27 // pred_check_branch
          %182 = sbr.rel (%p180) target = $region32
        $region31: #{tpu_custom_call.1} parent=27 // pred_region
          %s183 = sand.u32 %s27, 1
          %s184 = scalar_lea.sflag [#allocation3], %s183
          %s185 = sand.u32 %s27, 1
          %s186 = smul.addr %s185, 8
          %s187 = scalar_lea.vmem [#allocation2], %s186
          %s189 = ssub.s32 128, 128
          %190 = vsyncadd %s184, %s189
          %s191 = smul.addr %s17, 128
          %s192 = scalar_lea.hbm %s0, %s191
          %s194 = sshll.u32 %s187, 4
          %s195 = int_to_ptr.vmem [resolvable:$true] %s194
          %197 = dma.hbm_to_vmem [thread:$0]  %s192, 128, %s195, %s184
        $region32: #{tpu_custom_call.1} parent=27 // pred_fallthru
          _
      $region28: #{tpu_custom_call.1} parent=5 // pred_fallthru
        _
      %p198 = scmp.le.s32.totalorder 1, %s17
      %p199 = scmp.lt.s32.totalorder %s17, 3
      %p200 = pnand %p198, %p199
      %p201 = pneg %p200
      // Predicated region
      $region33: #{tpu_custom_call.1} parent=5 // pred_check
        _
      $region34: #{tpu_custom_call.1} parent=5 // pred_check_branch
        %203 = sbr.rel (%p200) target = $region36
      $region35: #{tpu_custom_call.1} parent=5 // pred_region
        %s204 = ssub.s32 %s17, 1
        %s205 = sand.u32 %s30, 1
        %s206 = scalar_lea.sflag [#allocation3], %s205
        %s207 = sand.u32 %s30, 1
        %s208 = smul.addr %s207, 8
        %s209 = scalar_lea.vmem [#allocation2], %s208
        // Predicated region
        $region37: #{tpu_custom_call.1} parent=35 // pred_check
          %p210 = pneg %p43
        $region38: #{tpu_custom_call.1} parent=35 // pred_check_branch
          %212 = sbr.rel (%p210) target = $region40
        $region39: #{tpu_custom_call.1} parent=35 // pred_region
          %213 = dma.done %s206, 128
        $region40: #{tpu_custom_call.1} parent=35 // pred_fallthru
          _
        // Predicated region
        $region41: #{tpu_custom_call.1} parent=35 // pred_check
          %p214 = pneg %p64
        $region42: #{tpu_custom_call.1} parent=35 // pred_check_branch
          %216 = sbr.rel (%p214) target = $region44
        $region43: #{tpu_custom_call.1} parent=35 // pred_region
          %217 = dma.done [#allocation6], 256
        $region44: #{tpu_custom_call.1} parent=35 // pred_fallthru
          _
        // Predicated region
        $region45: #{tpu_custom_call.1} parent=35 // pred_check
          %p218 = pneg %p85
        $region46: #{tpu_custom_call.1} parent=35 // pred_check_branch
          %220 = sbr.rel (%p218) target = $region48
        $region47: #{tpu_custom_call.1} parent=35 // pred_region
          %221 = dma.done [#allocation6], 256
        $region48: #{tpu_custom_call.1} parent=35 // pred_fallthru
          _
        %s222 = sand.u32 %s30, 1
        %s223 = scalar_lea.sflag [#allocation3], %s222
        %s224 = sand.u32 %s30, 1
        %s225 = smul.addr %s224, 8
        %s226 = scalar_lea.vmem [#allocation2], %s225
        %p227 = pneg %p43
        %p228 = pneg %p40
        %p229 = pneg %p64
        %p230 = pneg %p61
        %p231 = pneg %p85
        %p232 = pneg %p82
        %p233 = pneg %p106
        %p234 = pneg %p103
        %p235 = pneg %p132
        %p236 = pneg %p129
        %s237 = sand.u32 %s119, 1
        %s238 = scalar_lea.sflag [#allocation4], %s237
        %s239 = sand.u32 %s119, 1
        %s240 = smul.addr %s239, 8
        %s241 = scalar_lea.vmem [#allocation8], %s240
        %v243 = vld [vmem:[%s209] sm:$0xff]
        %v244 = vpack.c.bf16 %v243, %v243
        %v245 = vld [vmem:[#allocation5] sm:$0xf]
        %v246 = vld [vmem:[#allocation5 + $0x4] sm:$0xf]
        %v247 = vld [vmem:[#allocation5 + $0x8] sm:$0xf]
        %v248 = vld [vmem:[#allocation5 + $0xc] sm:$0xf]
        %v253 = vunpack.c.l.b16 %v245
        %v254 = vunpack.c.l.b16 %v246
        %v255 = vunpack.c.l.b16 %v247
        %v256 = vunpack.c.l.b16 %v248
        %v257 = vpack.c.b16 %v254, %v253
        %v258 = vpack.c.b16 %v256, %v255
        %vm261 = vcmask 261120
        %v263 = vsel %vm261, %v244, 0
        %265 = vmatprep.subr.bf16.mxu0 0
        %266 = vmatpush1.bf16.msra.mxu0 0
        %267 = vmatprep.subr.bf16.mxu0 0
        %268 = vmatpush1.bf16.msra.mxu0 0
        %269 = vmatprep.subr.bf16.mxu0 0
        %270 = vmatpush1.bf16.msra.mxu0 0
        %271 = vmatprep.subr.bf16.mxu0 0
        %272 = vmatpush1.bf16.msra.mxu0 0
        %273 = vmatprep.subr.bf16.mxu0 0
        %274 = vmatpush1.bf16.msra.mxu0 0
        %275 = vmatprep.subr.bf16.mxu0 0
        %276 = vmatpush1.bf16.msra.mxu0 0
        %277 = vmatprep.subr.bf16.mxu0 0
        %278 = vmatpush1.bf16.msra.mxu0 %v258
        %279 = vmatprep.subr.bf16.mxu0 0
        %280 = vmatpush1.bf16.msra.mxu0 %v257
        %281 = vmatprep.subr.bf16.mxu0 0
        %282 = vmatpush2.bf16.msra.mxu0 0
        %283 = vmatprep.subr.bf16.mxu0 0
        %284 = vmatpush2.bf16.msra.mxu0 0
        %285 = vmatprep.subr.bf16.mxu0 0
        %286 = vmatpush2.bf16.msra.mxu0 0
        %287 = vmatprep.subr.bf16.mxu0 0
        %288 = vmatpush2.bf16.msra.mxu0 0
        %289 = vmatprep.subr.bf16.mxu0 0
        %290 = vmatpush2.bf16.msra.mxu0 0
        %291 = vmatprep.subr.bf16.mxu0 0
        %292 = vmatpush2.bf16.msra.mxu0 0
        %293 = vmatprep.subr.bf16.mxu0 0
        %294 = vmatpush2.bf16.msra.mxu0 0
        %295 = vmatprep.subr.bf16.mxu0 0
        %296 = vmatpush2.bf16.msra.mxu0 0
        %297 = vmatprep.mubr.bf16.mxu0 0
        %298 = vmatmul.mubr.bf16.gmra.mxu0 %v263
        %v299 = vpop.f32.mrf.mxu0
        %v300 = vadd.f32 0.0, %v299
        %v301 = vpop.f32.mrf.mxu0
        %v302 = vpop.f32.mrf.mxu0
        %v303 = vpop.f32.mrf.mxu0
        %304 = vdwg.mxu0
        %v305 = vld [vmem:[#allocation7] sm:$0xf]
        %v306 = vld [vmem:[#allocation7 + $0x4] sm:$0xf]
        %v307 = vld [vmem:[#allocation7 + $0x8] sm:$0xf]
        %v308 = vld [vmem:[#allocation7 + $0xc] sm:$0xf]
        %v309 = vld [vmem:[%s3] sm:$0x1]
        %v310 = vmul.f32 %v300, 0.35355338
        %v311 = vpack.c.bf16 %v310, %v310
        %v312 = vpack.c.bf16 %v300, %v300
        %314 = vrot.lane.b32.xlu0 %v312, 96
        %v315 = vpop.permute.xlu0 %314
        %vm316 = vcmask 64512
        %v318 = vsel %vm316, %v311, 0
        %v321 = vsel %vm316, %v315, 0
        %323 = vmatprep.subr.bf16.mxu0 0
        %324 = vmatpush1.bf16.xpose.msra.mxu0 0
        %325 = vmatprep.subr.bf16.mxu0 0
        %326 = vmatpush1.bf16.xpose.msra.mxu0 0
        %327 = vmatprep.subr.bf16.mxu0 0
        %328 = vmatpush1.bf16.xpose.msra.mxu0 0
        %329 = vmatprep.subr.bf16.mxu0 0
        %330 = vmatpush1.bf16.xpose.msra.mxu0 0
        %331 = vmatprep.subr.bf16.mxu0 0
        %332 = vmatpush1.bf16.xpose.msra.mxu0 0
        %333 = vmatprep.subr.bf16.mxu0 0
        %334 = vmatpush1.bf16.xpose.msra.mxu0 0
        %335 = vmatprep.subr.bf16.mxu0 0
        %336 = vmatpush1.bf16.xpose.msra.mxu0 0
        %337 = vmatprep.subr.bf16.mxu0 0
        %338 = vmatpush1.bf16.xpose.msra.mxu0 %v321
        %339 = vmatprep.subr.bf16.mxu0 0
        %340 = vmatpush2.bf16.xpose.msra.mxu0 0
        %341 = vmatprep.subr.bf16.mxu0 0
        %342 = vmatpush2.bf16.xpose.msra.mxu0 0
        %343 = vmatprep.subr.bf16.mxu0 0
        %344 = vmatpush2.bf16.xpose.msra.mxu0 0
        %345 = vmatprep.subr.bf16.mxu0 0
        %346 = vmatpush2.bf16.xpose.msra.mxu0 0
        %347 = vmatprep.subr.bf16.mxu0 0
        %348 = vmatpush2.bf16.xpose.msra.mxu0 0
        %349 = vmatprep.subr.bf16.mxu0 0
        %350 = vmatpush2.bf16.xpose.msra.mxu0 0
        %351 = vmatprep.subr.bf16.mxu0 0
        %352 = vmatpush2.bf16.xpose.msra.mxu0 0
        %353 = vmatprep.subr.bf16.mxu0 0
        %354 = vmatpush2.bf16.xpose.msra.mxu0 0
        %355 = vmatprep.mubr.bf16.mxu0 0
        %356 = vmatmul.mubr.bf16.gmra.mxu0 %v318
        %v357 = vpop.f32.mrf.mxu0
        %v358 = vadd.f32 0.0, %v357
        %v359 = vpop.f32.mrf.mxu0
        %v360 = vpop.f32.mrf.mxu0
        %v361 = vpop.f32.mrf.mxu0
        %362 = vdwg.mxu0
        %v363 = vsel %vm316, %v358, -inf
        %364 = vmax.xlane.f32.xlu0 %v363
        %v365 = vpop.xlane.xlu0 %364
        %v366 = vsub.f32 %v358, %v365
        %v367 = vmul.f32 %v366, 1.442695
        %v368 = vpow.pop %v367
        %v369 = vsel %vm316, %v368, 0.0
        %370 = vadd.xlane.f32.xlu0 %v369
        %v371 = vpop.xlane.xlu0 %370
        %v372 = vrcp.pop %v371
        %v373 = vmul.f32 %v368, %v372
        %v374 = vpack.c.bf16 %v373, %v373
        %375 = vrot.lane.b32.xlu0 %v312, 64
        %v376 = vpop.permute.xlu0 %375
        %v378 = vsel %vm316, %v374, 0
        %vm380 = vcmask 1043456
        %v382 = vsel %vm380, %v376, 0
        %384 = vmatprep.subr.bf16.mxu0 0
        %385 = vmatpush1.bf16.msra.mxu0 0
        %386 = vmatprep.subr.bf16.mxu0 0
        %387 = vmatpush1.bf16.msra.mxu0 0
        %388 = vmatprep.subr.bf16.mxu0 0
        %389 = vmatpush1.bf16.msra.mxu0 0
        %390 = vmatprep.subr.bf16.mxu0 0
        %391 = vmatpush1.bf16.msra.mxu0 0
        %392 = vmatprep.subr.bf16.mxu0 0
        %393 = vmatpush1.bf16.msra.mxu0 0
        %394 = vmatprep.subr.bf16.mxu0 0
        %395 = vmatpush1.bf16.msra.mxu0 0
        %396 = vmatprep.subr.bf16.mxu0 0
        %397 = vmatpush1.bf16.msra.mxu0 0
        %398 = vmatprep.subr.bf16.mxu0 0
        %399 = vmatpush1.bf16.msra.mxu0 %v382
        %400 = vmatprep.subr.bf16.mxu0 0
        %401 = vmatpush2.bf16.msra.mxu0 0
        %402 = vmatprep.subr.bf16.mxu0 0
        %403 = vmatpush2.bf16.msra.mxu0 0
        %404 = vmatprep.subr.bf16.mxu0 0
        %405 = vmatpush2.bf16.msra.mxu0 0
        %406 = vmatprep.subr.bf16.mxu0 0
        %407 = vmatpush2.bf16.msra.mxu0 0
        %408 = vmatprep.subr.bf16.mxu0 0
        %409 = vmatpush2.bf16.msra.mxu0 0
        %410 = vmatprep.subr.bf16.mxu0 0
        %411 = vmatpush2.bf16.msra.mxu0 0
        %412 = vmatprep.subr.bf16.mxu0 0
        %413 = vmatpush2.bf16.msra.mxu0 0
        %414 = vmatprep.subr.bf16.mxu0 0
        %415 = vmatpush2.bf16.msra.mxu0 0
        %416 = vmatprep.mubr.bf16.mxu0 0
        %417 = vmatmul.mubr.bf16.gmra.mxu0 %v378
        %v418 = vpop.f32.mrf.mxu0
        %v419 = vadd.f32 0.0, %v418
        %v420 = vpop.f32.mrf.mxu0
        %v421 = vpop.f32.mrf.mxu0
        %v422 = vpop.f32.mrf.mxu0
        %423 = vdwg.mxu0
        %v424 = vpack.c.bf16 %v419, %v419
        %426 = vrot.lane.b32.xlu0 %v311, 120
        %v427 = vpop.permute.xlu0 %426
        %428 = vrot.lane.b32.xlu0 %v312, 88
        %v429 = vpop.permute.xlu0 %428
        %v431 = vsel %vm316, %v427, 0
        %v434 = vsel %vm316, %v429, 0
        %436 = vmatprep.subr.bf16.mxu0 0
        %437 = vmatpush1.bf16.xpose.msra.mxu0 0
        %438 = vmatprep.subr.bf16.mxu0 0
        %439 = vmatpush1.bf16.xpose.msra.mxu0 0
        %440 = vmatprep.subr.bf16.mxu0 0
        %441 = vmatpush1.bf16.xpose.msra.mxu0 0
        %442 = vmatprep.subr.bf16.mxu0 0
        %443 = vmatpush1.bf16.xpose.msra.mxu0 0
        %444 = vmatprep.subr.bf16.mxu0 0
        %445 = vmatpush1.bf16.xpose.msra.mxu0 0
        %446 = vmatprep.subr.bf16.mxu0 0
        %447 = vmatpush1.bf16.xpose.msra.mxu0 0
        %448 = vmatprep.subr.bf16.mxu0 0
        %449 = vmatpush1.bf16.xpose.msra.mxu0 0
        %450 = vmatprep.subr.bf16.mxu0 0
        %451 = vmatpush1.bf16.xpose.msra.mxu0 %v434
        %452 = vmatprep.subr.bf16.mxu0 0
        %453 = vmatpush2.bf16.xpose.msra.mxu0 0
        %454 = vmatprep.subr.bf16.mxu0 0
        %455 = vmatpush2.bf16.xpose.msra.mxu0 0
        %456 = vmatprep.subr.bf16.mxu0 0
        %457 = vmatpush2.bf16.xpose.msra.mxu0 0
        %458 = vmatprep.subr.bf16.mxu0 0
        %459 = vmatpush2.bf16.xpose.msra.mxu0 0
        %460 = vmatprep.subr.bf16.mxu0 0
        %461 = vmatpush2.bf16.xpose.msra.mxu0 0
        %462 = vmatprep.subr.bf16.mxu0 0
        %463 = vmatpush2.bf16.xpose.msra.mxu0 0
        %464 = vmatprep.subr.bf16.mxu0 0
        %465 = vmatpush2.bf16.xpose.msra.mxu0 0
        %466 = vmatprep.subr.bf16.mxu0 0
        %467 = vmatpush2.bf16.xpose.msra.mxu0 0
        %468 = vmatprep.mubr.bf16.mxu0 0
        %469 = vmatmul.mubr.bf16.gmra.mxu0 %v431
        %v470 = vpop.f32.mrf.mxu0
        %v471 = vadd.f32 0.0, %v470
        %v472 = vpop.f32.mrf.mxu0
        %v473 = vpop.f32.mrf.mxu0
        %v474 = vpop.f32.mrf.mxu0
        %475 = vdwg.mxu0
        %v476 = vsel %vm316, %v471, -inf
        %477 = vmax.xlane.f32.xlu0 %v476
        %v478 = vpop.xlane.xlu0 %477
        %v479 = vsub.f32 %v471, %v478
        %v480 = vmul.f32 %v479, 1.442695
        %v481 = vpow.pop %v480
        %v482 = vsel %vm316, %v481, 0.0
        %483 = vadd.xlane.f32.xlu0 %v482
        %v484 = vpop.xlane.xlu0 %483
        %v485 = vrcp.pop %v484
        %v486 = vmul.f32 %v481, %v485
        %v487 = vpack.c.bf16 %v486, %v486
        %488 = vrot.lane.b32.xlu0 %v312, 56
        %v489 = vpop.permute.xlu0 %488
        %v491 = vsel %vm316, %v487, 0
        %v494 = vsel %vm380, %v489, 0
        %496 = vmatprep.subr.bf16.mxu0 0
        %497 = vmatpush1.bf16.msra.mxu0 0
        %498 = vmatprep.subr.bf16.mxu0 0
        %499 = vmatpush1.bf16.msra.mxu0 0
        %500 = vmatprep.subr.bf16.mxu0 0
        %501 = vmatpush1.bf16.msra.mxu0 0
        %502 = vmatprep.subr.bf16.mxu0 0
        %503 = vmatpush1.bf16.msra.mxu0 0
        %504 = vmatprep.subr.bf16.mxu0 0
        %505 = vmatpush1.bf16.msra.mxu0 0
        %506 = vmatprep.subr.bf16.mxu0 0
        %507 = vmatpush1.bf16.msra.mxu0 0
        %508 = vmatprep.subr.bf16.mxu0 0
        %509 = vmatpush1.bf16.msra.mxu0 0
        %510 = vmatprep.subr.bf16.mxu0 0
        %511 = vmatpush1.bf16.msra.mxu0 %v494
        %512 = vmatprep.subr.bf16.mxu0 0
        %513 = vmatpush2.bf16.msra.mxu0 0
        %514 = vmatprep.subr.bf16.mxu0 0
        %515 = vmatpush2.bf16.msra.mxu0 0
        %516 = vmatprep.subr.bf16.mxu0 0
        %517 = vmatpush2.bf16.msra.mxu0 0
        %518 = vmatprep.subr.bf16.mxu0 0
        %519 = vmatpush2.bf16.msra.mxu0 0
        %520 = vmatprep.subr.bf16.mxu0 0
        %521 = vmatpush2.bf16.msra.mxu0 0
        %522 = vmatprep.subr.bf16.mxu0 0
        %523 = vmatpush2.bf16.msra.mxu0 0
        %524 = vmatprep.subr.bf16.mxu0 0
        %525 = vmatpush2.bf16.msra.mxu0 0
        %526 = vmatprep.subr.bf16.mxu0 0
        %527 = vmatpush2.bf16.msra.mxu0 0
        %528 = vmatprep.mubr.bf16.mxu0 0
        %529 = vmatmul.mubr.bf16.gmra.mxu0 %v491
        %v530 = vpop.f32.mrf.mxu0
        %v531 = vadd.f32 0.0, %v530
        %v532 = vpop.f32.mrf.mxu0
        %v533 = vpop.f32.mrf.mxu0
        %v534 = vpop.f32.mrf.mxu0
        %535 = vdwg.mxu0
        %v536 = vpack.c.bf16 %v531, %v531
        %v538 = vsel %vm316, %v536, 0
        %v541 = vsel %vm380, %v306, 0
        %543 = vmatprep.subr.bf16.mxu0 0
        %544 = vmatpush1.bf16.msra.mxu0 0
        %545 = vmatprep.subr.bf16.mxu0 0
        %546 = vmatpush1.bf16.msra.mxu0 0
        %547 = vmatprep.subr.bf16.mxu0 0
        %548 = vmatpush1.bf16.msra.mxu0 0
        %549 = vmatprep.subr.bf16.mxu0 0
        %550 = vmatpush1.bf16.msra.mxu0 0
        %551 = vmatprep.subr.bf16.mxu0 0
        %552 = vmatpush1.bf16.msra.mxu0 0
        %553 = vmatprep.subr.bf16.mxu0 0
        %554 = vmatpush1.bf16.msra.mxu0 0
        %555 = vmatprep.subr.bf16.mxu0 0
        %556 = vmatpush1.bf16.msra.mxu0 0
        %557 = vmatprep.subr.bf16.mxu0 0
        %558 = vmatpush1.bf16.msra.mxu0 %v541
        %559 = vmatprep.subr.bf16.mxu0 0
        %560 = vmatpush2.bf16.msra.mxu0 0
        %561 = vmatprep.subr.bf16.mxu0 0
        %562 = vmatpush2.bf16.msra.mxu0 0
        %563 = vmatprep.subr.bf16.mxu0 0
        %564 = vmatpush2.bf16.msra.mxu0 0
        %565 = vmatprep.subr.bf16.mxu0 0
        %566 = vmatpush2.bf16.msra.mxu0 0
        %567 = vmatprep.subr.bf16.mxu0 0
        %568 = vmatpush2.bf16.msra.mxu0 0
        %569 = vmatprep.subr.bf16.mxu0 0
        %570 = vmatpush2.bf16.msra.mxu0 0
        %571 = vmatprep.subr.bf16.mxu0 0
        %572 = vmatpush2.bf16.msra.mxu0 0
        %573 = vmatprep.subr.bf16.mxu0 0
        %574 = vmatpush2.bf16.msra.mxu0 0
        %575 = vmatprep.mubr.bf16.mxu0 0
        %576 = vmatmul.mubr.bf16.gmra.mxu0 %v538
        %v577 = vpop.f32.mrf.mxu0
        %v578 = vadd.f32 0.0, %v577
        %v579 = vpop.f32.mrf.mxu0
        %v580 = vpop.f32.mrf.mxu0
        %v581 = vpop.f32.mrf.mxu0
        %582 = vdwg.mxu0
        %v584 = vsel %vm316, %v424, 0
        %v587 = vsel %vm380, %v305, 0
        %589 = vmatprep.subr.bf16.mxu0 0
        %590 = vmatpush1.bf16.msra.mxu0 0
        %591 = vmatprep.subr.bf16.mxu0 0
        %592 = vmatpush1.bf16.msra.mxu0 0
        %593 = vmatprep.subr.bf16.mxu0 0
        %594 = vmatpush1.bf16.msra.mxu0 0
        %595 = vmatprep.subr.bf16.mxu0 0
        %596 = vmatpush1.bf16.msra.mxu0 0
        %597 = vmatprep.subr.bf16.mxu0 0
        %598 = vmatpush1.bf16.msra.mxu0 0
        %599 = vmatprep.subr.bf16.mxu0 0
        %600 = vmatpush1.bf16.msra.mxu0 0
        %601 = vmatprep.subr.bf16.mxu0 0
        %602 = vmatpush1.bf16.msra.mxu0 0
        %603 = vmatprep.subr.bf16.mxu0 0
        %604 = vmatpush1.bf16.msra.mxu0 %v587
        %605 = vmatprep.subr.bf16.mxu0 0
        %606 = vmatpush2.bf16.msra.mxu0 0
        %607 = vmatprep.subr.bf16.mxu0 0
        %608 = vmatpush2.bf16.msra.mxu0 0
        %609 = vmatprep.subr.bf16.mxu0 0
        %610 = vmatpush2.bf16.msra.mxu0 0
        %611 = vmatprep.subr.bf16.mxu0 0
        %612 = vmatpush2.bf16.msra.mxu0 0
        %613 = vmatprep.subr.bf16.mxu0 0
        %614 = vmatpush2.bf16.msra.mxu0 0
        %615 = vmatprep.subr.bf16.mxu0 0
        %616 = vmatpush2.bf16.msra.mxu0 0
        %617 = vmatprep.subr.bf16.mxu0 0
        %618 = vmatpush2.bf16.msra.mxu0 0
        %619 = vmatprep.subr.bf16.mxu0 0
        %620 = vmatpush2.bf16.msra.mxu0 0
        %621 = vmatprep.mubr.bf16.mxu0 0
        %622 = vmatmul.mubr.bf16.gmra.mxu0 %v584
        %v623 = vpop.f32.mrf.mxu0
        %v624 = vadd.f32 %v578, %v623
        %v625 = vpop.f32.mrf.mxu0
        %v626 = vpop.f32.mrf.mxu0
        %v627 = vpop.f32.mrf.mxu0
        %628 = vdwg.mxu0
        %629 = vrot.lane.b32.xlu0 %v311, 112
        %v630 = vpop.permute.xlu0 %629
        %631 = vrot.lane.b32.xlu0 %v312, 80
        %v632 = vpop.permute.xlu0 %631
        %v634 = vsel %vm316, %v630, 0
        %v637 = vsel %vm316, %v632, 0
        %639 = vmatprep.subr.bf16.mxu0 0
        %640 = vmatpush1.bf16.xpose.msra.mxu0 0
        %641 = vmatprep.subr.bf16.mxu0 0
        %642 = vmatpush1.bf16.xpose.msra.mxu0 0
        %643 = vmatprep.subr.bf16.mxu0 0
        %644 = vmatpush1.bf16.xpose.msra.mxu0 0
        %645 = vmatprep.subr.bf16.mxu0 0
        %646 = vmatpush1.bf16.xpose.msra.mxu0 0
        %647 = vmatprep.subr.bf16.mxu0 0
        %648 = vmatpush1.bf16.xpose.msra.mxu0 0
        %649 = vmatprep.subr.bf16.mxu0 0
        %650 = vmatpush1.bf16.xpose.msra.mxu0 0
        %651 = vmatprep.subr.bf16.mxu0 0
        %652 = vmatpush1.bf16.xpose.msra.mxu0 0
        %653 = vmatprep.subr.bf16.mxu0 0
        %654 = vmatpush1.bf16.xpose.msra.mxu0 %v637
        %655 = vmatprep.subr.bf16.mxu0 0
        %656 = vmatpush2.bf16.xpose.msra.mxu0 0
        %657 = vmatprep.subr.bf16.mxu0 0
        %658 = vmatpush2.bf16.xpose.msra.mxu0 0
        %659 = vmatprep.subr.bf16.mxu0 0
        %660 = vmatpush2.bf16.xpose.msra.mxu0 0
        %661 = vmatprep.subr.bf16.mxu0 0
        %662 = vmatpush2.bf16.xpose.msra.mxu0 0
        %663 = vmatprep.subr.bf16.mxu0 0
        %664 = vmatpush2.bf16.xpose.msra.mxu0 0
        %665 = vmatprep.subr.bf16.mxu0 0
        %666 = vmatpush2.bf16.xpose.msra.mxu0 0
        %667 = vmatprep.subr.bf16.mxu0 0
        %668 = vmatpush2.bf16.xpose.msra.mxu0 0
        %669 = vmatprep.subr.bf16.mxu0 0
        %670 = vmatpush2.bf16.xpose.msra.mxu0 0
        %671 = vmatprep.mubr.bf16.mxu0 0
        %672 = vmatmul.mubr.bf16.gmra.mxu0 %v634
        %v673 = vpop.f32.mrf.mxu0
        %v674 = vadd.f32 0.0, %v673
        %v675 = vpop.f32.mrf.mxu0
        %v676 = vpop.f32.mrf.mxu0
        %v677 = vpop.f32.mrf.mxu0
        %678 = vdwg.mxu0
        %v679 = vsel %vm316, %v674, -inf
        %680 = vmax.xlane.f32.xlu0 %v679
        %v681 = vpop.xlane.xlu0 %680
        %v682 = vsub.f32 %v674, %v681
        %v683 = vmul.f32 %v682, 1.442695
        %v684 = vpow.pop %v683
        %v685 = vsel %vm316, %v684, 0.0
        %686 = vadd.xlane.f32.xlu0 %v685
        %v687 = vpop.xlane.xlu0 %686
        %v688 = vrcp.pop %v687
        %v689 = vmul.f32 %v684, %v688
        %v690 = vpack.c.bf16 %v689, %v689
        %691 = vrot.lane.b32.xlu0 %v312, 48
        %v692 = vpop.permute.xlu0 %691
        %v694 = vsel %vm316, %v690, 0
        %v697 = vsel %vm380, %v692, 0
        %699 = vmatprep.subr.bf16.mxu0 0
        %700 = vmatpush1.bf16.msra.mxu0 0
        %701 = vmatprep.subr.bf16.mxu0 0
        %702 = vmatpush1.bf16.msra.mxu0 0
        %703 = vmatprep.subr.bf16.mxu0 0
        %704 = vmatpush1.bf16.msra.mxu0 0
        %705 = vmatprep.subr.bf16.mxu0 0
        %706 = vmatpush1.bf16.msra.mxu0 0
        %707 = vmatprep.subr.bf16.mxu0 0
        %708 = vmatpush1.bf16.msra.mxu0 0
        %709 = vmatprep.subr.bf16.mxu0 0
        %710 = vmatpush1.bf16.msra.mxu0 0
        %711 = vmatprep.subr.bf16.mxu0 0
        %712 = vmatpush1.bf16.msra.mxu0 0
        %713 = vmatprep.subr.bf16.mxu0 0
        %714 = vmatpush1.bf16.msra.mxu0 %v697
        %715 = vmatprep.subr.bf16.mxu0 0
        %716 = vmatpush2.bf16.msra.mxu0 0
        %717 = vmatprep.subr.bf16.mxu0 0
        %718 = vmatpush2.bf16.msra.mxu0 0
        %719 = vmatprep.subr.bf16.mxu0 0
        %720 = vmatpush2.bf16.msra.mxu0 0
        %721 = vmatprep.subr.bf16.mxu0 0
        %722 = vmatpush2.bf16.msra.mxu0 0
        %723 = vmatprep.subr.bf16.mxu0 0
        %724 = vmatpush2.bf16.msra.mxu0 0
        %725 = vmatprep.subr.bf16.mxu0 0
        %726 = vmatpush2.bf16.msra.mxu0 0
        %727 = vmatprep.subr.bf16.mxu0 0
        %728 = vmatpush2.bf16.msra.mxu0 0
        %729 = vmatprep.subr.bf16.mxu0 0
        %730 = vmatpush2.bf16.msra.mxu0 0
        %731 = vmatprep.mubr.bf16.mxu0 0
        %732 = vmatmul.mubr.bf16.gmra.mxu0 %v694
        %v733 = vpop.f32.mrf.mxu0
        %v734 = vadd.f32 0.0, %v733
        %v735 = vpop.f32.mrf.mxu0
        %v736 = vpop.f32.mrf.mxu0
        %v737 = vpop.f32.mrf.mxu0
        %738 = vdwg.mxu0
        %v739 = vpack.c.bf16 %v734, %v734
        %v741 = vsel %vm316, %v739, 0
        %v744 = vsel %vm380, %v307, 0
        %746 = vmatprep.subr.bf16.mxu0 0
        %747 = vmatpush1.bf16.msra.mxu0 0
        %748 = vmatprep.subr.bf16.mxu0 0
        %749 = vmatpush1.bf16.msra.mxu0 0
        %750 = vmatprep.subr.bf16.mxu0 0
        %751 = vmatpush1.bf16.msra.mxu0 0
        %752 = vmatprep.subr.bf16.mxu0 0
        %753 = vmatpush1.bf16.msra.mxu0 0
        %754 = vmatprep.subr.bf16.mxu0 0
        %755 = vmatpush1.bf16.msra.mxu0 0
        %756 = vmatprep.subr.bf16.mxu0 0
        %757 = vmatpush1.bf16.msra.mxu0 0
        %758 = vmatprep.subr.bf16.mxu0 0
        %759 = vmatpush1.bf16.msra.mxu0 0
        %760 = vmatprep.subr.bf16.mxu0 0
        %761 = vmatpush1.bf16.msra.mxu0 %v744
        %762 = vmatprep.subr.bf16.mxu0 0
        %763 = vmatpush2.bf16.msra.mxu0 0
        %764 = vmatprep.subr.bf16.mxu0 0
        %765 = vmatpush2.bf16.msra.mxu0 0
        %766 = vmatprep.subr.bf16.mxu0 0
        %767 = vmatpush2.bf16.msra.mxu0 0
        %768 = vmatprep.subr.bf16.mxu0 0
        %769 = vmatpush2.bf16.msra.mxu0 0
        %770 = vmatprep.subr.bf16.mxu0 0
        %771 = vmatpush2.bf16.msra.mxu0 0
        %772 = vmatprep.subr.bf16.mxu0 0
        %773 = vmatpush2.bf16.msra.mxu0 0
        %774 = vmatprep.subr.bf16.mxu0 0
        %775 = vmatpush2.bf16.msra.mxu0 0
        %776 = vmatprep.subr.bf16.mxu0 0
        %777 = vmatpush2.bf16.msra.mxu0 0
        %778 = vmatprep.mubr.bf16.mxu0 0
        %779 = vmatmul.mubr.bf16.gmra.mxu0 %v741
        %v780 = vpop.f32.mrf.mxu0
        %v781 = vadd.f32 0.0, %v780
        %v782 = vpop.f32.mrf.mxu0
        %v783 = vpop.f32.mrf.mxu0
        %v784 = vpop.f32.mrf.mxu0
        %785 = vdwg.mxu0
        %v786 = vadd.f32 %v624, %v781
        %787 = vrot.lane.b32.xlu0 %v311, 104
        %v788 = vpop.permute.xlu0 %787
        %789 = vrot.lane.b32.xlu0 %v312, 72
        %v790 = vpop.permute.xlu0 %789
        %v792 = vsel %vm316, %v788, 0
        %v795 = vsel %vm316, %v790, 0
        %797 = vmatprep.subr.bf16.mxu0 0
        %798 = vmatpush1.bf16.xpose.msra.mxu0 0
        %799 = vmatprep.subr.bf16.mxu0 0
        %800 = vmatpush1.bf16.xpose.msra.mxu0 0
        %801 = vmatprep.subr.bf16.mxu0 0
        %802 = vmatpush1.bf16.xpose.msra.mxu0 0
        %803 = vmatprep.subr.bf16.mxu0 0
        %804 = vmatpush1.bf16.xpose.msra.mxu0 0
        %805 = vmatprep.subr.bf16.mxu0 0
        %806 = vmatpush1.bf16.xpose.msra.mxu0 0
        %807 = vmatprep.subr.bf16.mxu0 0
        %808 = vmatpush1.bf16.xpose.msra.mxu0 0
        %809 = vmatprep.subr.bf16.mxu0 0
        %810 = vmatpush1.bf16.xpose.msra.mxu0 0
        %811 = vmatprep.subr.bf16.mxu0 0
        %812 = vmatpush1.bf16.xpose.msra.mxu0 %v795
        %813 = vmatprep.subr.bf16.mxu0 0
        %814 = vmatpush2.bf16.xpose.msra.mxu0 0
        %815 = vmatprep.subr.bf16.mxu0 0
        %816 = vmatpush2.bf16.xpose.msra.mxu0 0
        %817 = vmatprep.subr.bf16.mxu0 0
        %818 = vmatpush2.bf16.xpose.msra.mxu0 0
        %819 = vmatprep.subr.bf16.mxu0 0
        %820 = vmatpush2.bf16.xpose.msra.mxu0 0
        %821 = vmatprep.subr.bf16.mxu0 0
        %822 = vmatpush2.bf16.xpose.msra.mxu0 0
        %823 = vmatprep.subr.bf16.mxu0 0
        %824 = vmatpush2.bf16.xpose.msra.mxu0 0
        %825 = vmatprep.subr.bf16.mxu0 0
        %826 = vmatpush2.bf16.xpose.msra.mxu0 0
        %827 = vmatprep.subr.bf16.mxu0 0
        %828 = vmatpush2.bf16.xpose.msra.mxu0 0
        %829 = vmatprep.mubr.bf16.mxu0 0
        %830 = vmatmul.mubr.bf16.gmra.mxu0 %v792
        %v831 = vpop.f32.mrf.mxu0
        %v832 = vadd.f32 0.0, %v831
        %v833 = vpop.f32.mrf.mxu0
        %v834 = vpop.f32.mrf.mxu0
        %v835 = vpop.f32.mrf.mxu0
        %836 = vdwg.mxu0
        %v837 = vsel %vm316, %v832, -inf
        %838 = vmax.xlane.f32.xlu0 %v837
        %v839 = vpop.xlane.xlu0 %838
        %v840 = vsub.f32 %v832, %v839
        %v841 = vmul.f32 %v840, 1.442695
        %v842 = vpow.pop %v841
        %v843 = vsel %vm316, %v842, 0.0
        %844 = vadd.xlane.f32.xlu0 %v843
        %v845 = vpop.xlane.xlu0 %844
        %v846 = vrcp.pop %v845
        %v847 = vmul.f32 %v842, %v846
        %v848 = vpack.c.bf16 %v847, %v847
        %849 = vrot.lane.b32.xlu0 %v312, 40
        %v850 = vpop.permute.xlu0 %849
        %v852 = vsel %vm316, %v848, 0
        %v855 = vsel %vm380, %v850, 0
        %857 = vmatprep.subr.bf16.mxu0 0
        %858 = vmatpush1.bf16.msra.mxu0 0
        %859 = vmatprep.subr.bf16.mxu0 0
        %860 = vmatpush1.bf16.msra.mxu0 0
        %861 = vmatprep.subr.bf16.mxu0 0
        %862 = vmatpush1.bf16.msra.mxu0 0
        %863 = vmatprep.subr.bf16.mxu0 0
        %864 = vmatpush1.bf16.msra.mxu0 0
        %865 = vmatprep.subr.bf16.mxu0 0
        %866 = vmatpush1.bf16.msra.mxu0 0
        %867 = vmatprep.subr.bf16.mxu0 0
        %868 = vmatpush1.bf16.msra.mxu0 0
        %869 = vmatprep.subr.bf16.mxu0 0
        %870 = vmatpush1.bf16.msra.mxu0 0
        %871 = vmatprep.subr.bf16.mxu0 0
        %872 = vmatpush1.bf16.msra.mxu0 %v855
        %873 = vmatprep.subr.bf16.mxu0 0
        %874 = vmatpush2.bf16.msra.mxu0 0
        %875 = vmatprep.subr.bf16.mxu0 0
        %876 = vmatpush2.bf16.msra.mxu0 0
        %877 = vmatprep.subr.bf16.mxu0 0
        %878 = vmatpush2.bf16.msra.mxu0 0
        %879 = vmatprep.subr.bf16.mxu0 0
        %880 = vmatpush2.bf16.msra.mxu0 0
        %881 = vmatprep.subr.bf16.mxu0 0
        %882 = vmatpush2.bf16.msra.mxu0 0
        %883 = vmatprep.subr.bf16.mxu0 0
        %884 = vmatpush2.bf16.msra.mxu0 0
        %885 = vmatprep.subr.bf16.mxu0 0
        %886 = vmatpush2.bf16.msra.mxu0 0
        %887 = vmatprep.subr.bf16.mxu0 0
        %888 = vmatpush2.bf16.msra.mxu0 0
        %889 = vmatprep.mubr.bf16.mxu0 0
        %890 = vmatmul.mubr.bf16.gmra.mxu0 %v852
        %v891 = vpop.f32.mrf.mxu0
        %v892 = vadd.f32 0.0, %v891
        %v893 = vpop.f32.mrf.mxu0
        %v894 = vpop.f32.mrf.mxu0
        %v895 = vpop.f32.mrf.mxu0
        %896 = vdwg.mxu0
        %v897 = vpack.c.bf16 %v892, %v892
        %v899 = vsel %vm316, %v897, 0
        %v902 = vsel %vm380, %v308, 0
        %904 = vmatprep.subr.bf16.mxu0 0
        %905 = vmatpush1.bf16.msra.mxu0 0
        %906 = vmatprep.subr.bf16.mxu0 0
        %907 = vmatpush1.bf16.msra.mxu0 0
        %908 = vmatprep.subr.bf16.mxu0 0
        %909 = vmatpush1.bf16.msra.mxu0 0
        %910 = vmatprep.subr.bf16.mxu0 0
        %911 = vmatpush1.bf16.msra.mxu0 0
        %912 = vmatprep.subr.bf16.mxu0 0
        %913 = vmatpush1.bf16.msra.mxu0 0
        %914 = vmatprep.subr.bf16.mxu0 0
        %915 = vmatpush1.bf16.msra.mxu0 0
        %916 = vmatprep.subr.bf16.mxu0 0
        %917 = vmatpush1.bf16.msra.mxu0 0
        %918 = vmatprep.subr.bf16.mxu0 0
        %919 = vmatpush1.bf16.msra.mxu0 %v902
        %920 = vmatprep.subr.bf16.mxu0 0
        %921 = vmatpush2.bf16.msra.mxu0 0
        %922 = vmatprep.subr.bf16.mxu0 0
        %923 = vmatpush2.bf16.msra.mxu0 0
        %924 = vmatprep.subr.bf16.mxu0 0
        %925 = vmatpush2.bf16.msra.mxu0 0
        %926 = vmatprep.subr.bf16.mxu0 0
        %927 = vmatpush2.bf16.msra.mxu0 0
        %928 = vmatprep.subr.bf16.mxu0 0
        %929 = vmatpush2.bf16.msra.mxu0 0
        %930 = vmatprep.subr.bf16.mxu0 0
        %931 = vmatpush2.bf16.msra.mxu0 0
        %932 = vmatprep.subr.bf16.mxu0 0
        %933 = vmatpush2.bf16.msra.mxu0 0
        %934 = vmatprep.subr.bf16.mxu0 0
        %935 = vmatpush2.bf16.msra.mxu0 0
        %936 = vmatprep.mubr.bf16.mxu0 0
        %937 = vmatmul.mubr.bf16.gmra.mxu0 %v899
        %v938 = vpop.f32.mrf.mxu0
        %v939 = vadd.f32 0.0, %v938
        %v940 = vpop.f32.mrf.mxu0
        %v941 = vpop.f32.mrf.mxu0
        %v942 = vpop.f32.mrf.mxu0
        %943 = vdwg.mxu0
        %v944 = vadd.f32 %v786, %v939
        %v946 = vlaneseq
        %v947 = vshrl.u32 %v946, 7
        %v948 = vsub.s32 0, %v947
        %v949 = vrot.slane %v309, %v948
        %v951 = vadd.f32 %v944, %v949
        %952 = vst.msk [vmem:[%s241] sm:$0xff] %vm261, %v951
        %s953 = sand.u32 %s119, 1
        %s954 = scalar_lea.sflag [#allocation4], %s953
        %s955 = sand.u32 %s119, 1
        %s956 = smul.addr %s955, 8
        %s957 = scalar_lea.vmem [#allocation8], %s956
        // Predicated region
        $region49: #{tpu_custom_call.1} parent=35 // pred_check
          %p958 = pneg %p129
        $region50: #{tpu_custom_call.1} parent=35 // pred_check_branch
          %960 = sbr.rel (%p958) target = $region52
        $region51: #{tpu_custom_call.1} parent=35 // pred_region
          %s962 = ssub.s32 128, 128
          %963 = vsyncadd %s954, %s962
          %s964 = smul.addr %s22, 128
          %s965 = scalar_lea.hbm %s4, %s964
          %s967 = sshll.u32 %s957, 4
          %s968 = int_to_ptr.vmem [resolvable:$true] %s967
          %970 = dma.vmem_to_hbm [thread:$0]  %s968, 128, %s965, %s954
        $region52: #{tpu_custom_call.1} parent=35 // pred_fallthru
          _
      $region36: #{tpu_custom_call.1} parent=5 // pred_fallthru
        _
      %p971 = scmp.le.s32.totalorder 2, %s17
      // Predicated region
      $region53: #{tpu_custom_call.1} parent=5 // pred_check
        %p972 = pneg %p971
      $region54: #{tpu_custom_call.1} parent=5 // pred_check_branch
        %974 = sbr.rel (%p972) target = $region56
      $region55: #{tpu_custom_call.1} parent=5 // pred_region
        %s975 = ssub.s32 %s17, 2
        // Predicated region
        $region57: #{tpu_custom_call.1} parent=55 // pred_check
          %p976 = pneg %p135
        $region58: #{tpu_custom_call.1} parent=55 // pred_check_branch
          %978 = sbr.rel (%p976) target = $region60
        $region59: #{tpu_custom_call.1} parent=55 // pred_region
          %s979 = sand.u32 %s120, 1
          %s980 = scalar_lea.sflag [#allocation4], %s979
          %s981 = sand.u32 %s120, 1
          %s982 = smul.addr %s981, 8
          %s983 = scalar_lea.vmem [#allocation8], %s982
          %984 = dma.done %s980, 128
        $region60: #{tpu_custom_call.1} parent=55 // pred_fallthru
          _
      $region56: #{tpu_custom_call.1} parent=5 // pred_fallthru
        _
    $region6: #{tpu_custom_call.1} parent=1 // loop_footer
      %s21 = sadd.s32 1, %s17
    $region7: #{tpu_custom_call.1} parent=1 // loop_footer_branch
      %16 = sbr.rel target = $region3
    $region8: #{tpu_custom_call.1} parent=1 // loop_exit
      _
    %985 = vsyncpa [#allocation3], 1
    %s986 = scalar_lea.sflag [#allocation3], 1
    %987 = vsyncpa %s986, 1
    %988 = vsyncpa [#allocation6], 1
    %989 = vsyncpa [#allocation4], 1
    %s990 = scalar_lea.sflag [#allocation4], 1
    %991 = vsyncpa %s990, 1

</llo_original>
